<compile_context>
chip_gen: v5e
topology: v5e:2x2
jax: 0.10.0
libtpu: 0.0.40
codegen_flags: <defaults>
</compile_context>

<pallas_src>
import jax
import jax.numpy as jnp
from jax.experimental import pallas as pl
from jax.experimental.pallas import tpu as pltpu


def _locked_dropout_kernel(mask_ref, x_ref, o_ref):
    # mask_ref: (1, tile_l), resident across the seq-tile grid axis.
    # x_ref / o_ref: (tile_s, tile_l) lane-dense streaming tiles.
    o_ref[...] = x_ref[...] * mask_ref[...]


def _choose_lane_tile(BH, itemsize, target_bytes):
    """Full width unless even an 8-row slab would blow the target; then split
    along multiples of 128 that divide BH."""
    if BH % 128 != 0 or 8 * BH * itemsize <= target_bytes:
        return BH
    max_lanes = max(128, ((target_bytes // (8 * itemsize)) // 128) * 128)
    for cand in range(min(BH, max_lanes), 127, -128):
        if BH % cand == 0:
            return cand
    return BH


def _choose_seq_tile(S, tile_l, itemsize, target_bytes):
    """Largest divisor of S giving ~target_bytes per block (prefer mult. of 8)."""
    max_rows = max(1, target_bytes // max(1, tile_l * itemsize))
    if max_rows >= S:
        return S
    for t in range(int(max_rows), 0, -1):
        if S % t == 0 and t % 8 == 0:
            return t
    for t in range(int(max_rows), 0, -1):
        if S % t == 0:
            return t
    return 1


def locked_dropout(x, key, *, p=0.5, training=True, tile_s=None,
                   target_block_bytes=4 << 20):
    """LockedDropout forward. x: (S, B, H). key: jax PRNG key."""
    if not training or p == 0.0:
        return x
    assert 0.0 <= p < 1.0, "p must be in [0, 1); p == 1 would scale by inf"

    S, B, H = x.shape
    BH = B * H
    x2 = x.reshape(S, BH)                      # free layout plumbing

    # One mask per (batch, hidden) element, broadcast over the sequence dim.
    scale = 1.0 / (1.0 - p)
    keep = jax.random.bernoulli(key, 1.0 - p, (1, BH))
    mask = jnp.where(keep, scale, 0.0).astype(x.dtype)

    itemsize = jnp.dtype(x.dtype).itemsize
    tile_l = _choose_lane_tile(BH, itemsize, target_block_bytes)
    if tile_s is None:
        tile_s = _choose_seq_tile(S, tile_l, itemsize, target_block_bytes)
    assert S % tile_s == 0, "tile_s must divide seq_len"
    assert BH % tile_l == 0

    block_bytes = tile_s * tile_l * itemsize
    mask_bytes = tile_l * itemsize
    # in + out double-buffered, plus the (double-buffered) resident mask.
    vmem_limit = 4 * block_bytes + 2 * mask_bytes + (2 << 20)
    vmem_limit = int(min(48 << 20, max(32 << 20, vmem_limit)))

    grid = (S // tile_s, BH // tile_l)

    out2 = pl.pallas_call(
        _locked_dropout_kernel,
        out_shape=jax.ShapeDtypeStruct((S, BH), x.dtype),
        grid_spec=pl.GridSpec(
            grid=grid,
            in_specs=[
                pl.BlockSpec((1, tile_l), lambda i, j: (0, j)),       # mask (resident over i)
                pl.BlockSpec((tile_s, tile_l), lambda i, j: (i, j)),  # x tile
            ],
            out_specs=pl.BlockSpec((tile_s, tile_l), lambda i, j: (i, j)),
        ),
        compiler_params=pltpu.CompilerParams(
            dimension_semantics=("parallel", "parallel"),  # all tiles independent
            vmem_limit_bytes=vmem_limit,
        ),
    )(mask, x2)

    return out2.reshape(S, B, H)


def _check_case(x, key, p):
    y = jax.block_until_ready(locked_dropout(x, key, p=p, training=True))
    ratio = jnp.where(jnp.abs(x) > 1e-6, y / x, 0.0)
    # mask must be "locked" across the sequence dim
    locked = bool(jnp.all(jnp.abs(ratio - ratio[0:1]) < 1e-5))
    # every kept element scaled by 1/(1-p), dropped elements exactly 0
    valid_vals = bool(
        jnp.all((jnp.abs(ratio) < 1e-5)
                | (jnp.abs(ratio - 1.0 / (1.0 - p)) < 1e-4)))
    drop_frac = float(jnp.mean((jnp.abs(ratio[0]) < 1e-5).astype(jnp.float32)))
    plausible = 0.1 < drop_frac < 0.9
    return locked and valid_vals and plausible


if __name__ == "__main__":
    key = jax.random.PRNGKey(0)
    kx1, kx2, kmask = jax.random.split(key, 3)

    p = 0.5

    # Case 1: lane-aligned hidden (BH = 4*32 = 128, multiple of 128).
    S1, B1, H1 = 8, 4, 32
    x1 = jax.random.normal(kx1, (S1, B1, H1), dtype=jnp.float32)
    ok1 = _check_case(x1, kmask, p)

    # Case 2: ragged width (BH = 3*20 = 60) -> full-array last-dim block path.
    S2, B2, H2 = 16, 3, 20
    x2 = jax.random.normal(kx2, (S2, B2, H2), dtype=jnp.float32)
    ok2 = _check_case(x2, kmask, p)

    # Eval mode / p == 0 -> identity.
    identity = bool(jnp.all(locked_dropout(x1, kmask, p=p, training=False) == x1))
    identity &= bool(jnp.all(locked_dropout(x1, kmask, p=0.0, training=True) == x1))

    assert ok1 and ok2 and identity, (ok1, ok2, identity)
    print("KERNEL_OK")
</pallas_src>

<mosaic_0001>
module attributes {stable_mosaic.version = 11 : i64} {
  func.func @_locked_dropout_kernel(%arg0: i32, %arg1: i32, %arg2: memref<1x128xf32, #tpu.memory_space<vmem>>, %arg3: memref<8x128xf32, #tpu.memory_space<vmem>>, %arg4: memref<8x128xf32, #tpu.memory_space<vmem>>) attributes {dimension_semantics = [#tpu.dimension_semantics<parallel>, #tpu.dimension_semantics<parallel>], iteration_bounds = array<i64: 1, 1>, scalar_prefetch = 0 : i64, scratch_operands = 0 : i64, tpu.core_type = #tpu.core_type<tc>, window_params = [{transform_indices = @transform_0, window_bounds = array<i64: 1, 128>}, {transform_indices = @transform_1, window_bounds = array<i64: 8, 128>}, {transform_indices = @transform_2, window_bounds = array<i64: 8, 128>}]} {
    %c0 = arith.constant 0 : index
    %c0_0 = arith.constant 0 : index
    %0 = vector.load %arg3[%c0, %c0_0] : memref<8x128xf32, #tpu.memory_space<vmem>>, vector<8x128xf32>
    %c0_1 = arith.constant 0 : index
    %c0_2 = arith.constant 0 : index
    %1 = vector.load %arg2[%c0_1, %c0_2] : memref<1x128xf32, #tpu.memory_space<vmem>>, vector<1x128xf32>
    %2 = vector.broadcast %1 : vector<1x128xf32> to vector<8x128xf32>
    %3 = arith.mulf %0, %2 : vector<8x128xf32>
    %c0_3 = arith.constant 0 : index
    %c0_4 = arith.constant 0 : index
    %4 = vector.load %arg4[%c0_3, %c0_4] : memref<8x128xf32, #tpu.memory_space<vmem>>, vector<8x128xf32>
    tpu.vector_store %arg4[%c0_3, %c0_4], %3 {strides = array<i32>} : memref<8x128xf32, #tpu.memory_space<vmem>>, vector<8x128xf32>,
    return
  }
  func.func @transform_0(%arg0: i32, %arg1: i32) -> (i32, i32) {
    %c0_i32 = arith.constant 0 : i32
    %c0_i32_0 = arith.constant 0 : i32
    return %c0_i32, %arg1 : i32, i32
  }
  func.func @transform_1(%arg0: i32, %arg1: i32) -> (i32, i32) {
    %c0_i32 = arith.constant 0 : i32
    return %arg0, %arg1 : i32, i32
  }
  func.func @transform_2(%arg0: i32, %arg1: i32) -> (i32, i32) {
    %c0_i32 = arith.constant 0 : i32
    return %arg0, %arg1 : i32, i32
  }
}

</mosaic_0001>

<llo_original>
// kernel: tpu_custom_call.1
$region0: #{tpu_custom_call.1}
  #allocation0 [shape = 'u32[]', space=smem, size = 0x4, offset = 0x4, fixed_abs, tag = 'smem constant byte address 0x4 - core index']
  #allocation1 [shape = 'u32[72,128]{1,0:T(1,128)}', space=vmem, size = 0x9000, scoped, tag = 'internal scratch']
  %s0 = inlined_call_operand.hbm [shape: f32[1,128], index: 0, kind: input, shape index: {}]
  %s1 = inlined_call_operand.hbm [shape: f32[8,128], index: 1, kind: input, shape index: {}]
  %s2 = inlined_call_operand.hbm [shape: f32[8,128], index: 2, kind: output, shape index: {}]
  %s3 = sld [smem:[#allocation0]]
  $region26: #{tpu_custom_call.1} parent=0
    _
  %s5 = ssub.s32 1, %s3
  %s6 = scalar_select 0, %s5, %s3
  $region1: #{tpu_custom_call.1} parent=0
    #allocation2 [shape = 'u8[512]{0}', space=vmem, size = 0x400, scoped, tag = 'input window, operand 0, single buffered']
    #allocation3 [shape = 's32[1]{0}', space=sflag, size = 0x4, scoped, tag = 'scoped memory for tpu_custom_call.1']
    #allocation4 [shape = 's32[1]{0}', space=sflag, size = 0x4, scoped, tag = 'scoped memory for tpu_custom_call.1']
    #allocation5 [shape = 'u8[4096]{0}', space=vmem, size = 0x1000, scoped, tag = 'input window, operand 1, single buffered']
    #allocation6 [shape = 's32[1]{0}', space=sflag, size = 0x4, scoped, tag = 'scoped memory for tpu_custom_call.1']
    #allocation7 [shape = 'u8[4096]{0}', space=vmem, size = 0x1000, scoped, tag = 'output window, operand 0, single buffered']
    %7 = vsyncpa [#allocation3], 0
    %8 = vsyncpa [#allocation6], 0
    %9 = vsyncpa [#allocation4], 0
    // Predicated region
    $region2: #{tpu_custom_call.1} parent=1 // pred_check
      _
    $region3: #{tpu_custom_call.1} parent=1 // pred_check_branch
      %11 = sbr.rel (0) target = $region5
    $region4: #{tpu_custom_call.1} parent=1 // pred_region
      %13 = vsyncadd [#allocation3], 0
      %s15 = sshll.u32 %s0, 4
      %s16 = int_to_ptr.hbm [resolvable:$true] %s15
      %s17 = sshll.u32 [#allocation2], 4
      %s18 = int_to_ptr.vmem [resolvable:$true] %s17
      %20 = dma.hbm_to_vmem [thread:$0]  %s16, 16, %s18, [#allocation3]
    $region5: #{tpu_custom_call.1} parent=1 // pred_fallthru
      _
    // Predicated region
    $region6: #{tpu_custom_call.1} parent=1 // pred_check
      _
    $region7: #{tpu_custom_call.1} parent=1 // pred_check_branch
      %22 = sbr.rel (0) target = $region9
    $region8: #{tpu_custom_call.1} parent=1 // pred_region
      %24 = vsyncadd [#allocation6], 0
      %s26 = sshll.u32 %s1, 4
      %s27 = int_to_ptr.hbm [resolvable:$true] %s26
      %s28 = sshll.u32 [#allocation5], 4
      %s29 = int_to_ptr.vmem [resolvable:$true] %s28
      %31 = dma.hbm_to_vmem [thread:$0]  %s27, 128, %s29, [#allocation6]
    $region9: #{tpu_custom_call.1} parent=1 // pred_fallthru
      _
    // Predicated region
    $region10: #{tpu_custom_call.1} parent=1 // pred_check
      _
    $region11: #{tpu_custom_call.1} parent=1 // pred_check_branch
      %33 = sbr.rel (0) target = $region13
    $region12: #{tpu_custom_call.1} parent=1 // pred_region
      %35 = dma.done [#allocation3], 16
    $region13: #{tpu_custom_call.1} parent=1 // pred_fallthru
      _
    // Predicated region
    $region14: #{tpu_custom_call.1} parent=1 // pred_check
      _
    $region15: #{tpu_custom_call.1} parent=1 // pred_check_branch
      %37 = sbr.rel (0) target = $region17
    $region16: #{tpu_custom_call.1} parent=1 // pred_region
      %39 = dma.done [#allocation6], 128
    $region17: #{tpu_custom_call.1} parent=1 // pred_fallthru
      _
    %v40 = vld [vmem:[#allocation5] sm:$0xff]
    %v41 = vld [vmem:[#allocation2] sm:$0x1]
    %v43 = vperm.slane %v41, 0
    %v45 = vmul.f32 %v40, %v43
    %46 = vst [vmem:[#allocation7] sm:$0xff] %v45
    // Predicated region
    $region18: #{tpu_custom_call.1} parent=1 // pred_check
      _
    $region19: #{tpu_custom_call.1} parent=1 // pred_check_branch
      %48 = sbr.rel (0) target = $region21
    $region20: #{tpu_custom_call.1} parent=1 // pred_region
      %50 = vsyncadd [#allocation4], 0
      %s52 = sshll.u32 [#allocation7], 4
      %s53 = int_to_ptr.vmem [resolvable:$true] %s52
      %s54 = sshll.u32 %s2, 4
      %s55 = int_to_ptr.hbm [resolvable:$true] %s54
      %57 = dma.vmem_to_hbm [thread:$0]  %s53, 128, %s55, [#allocation4]
    $region21: #{tpu_custom_call.1} parent=1 // pred_fallthru
      _
    // Predicated region
    $region22: #{tpu_custom_call.1} parent=1 // pred_check
      _
    $region23: #{tpu_custom_call.1} parent=1 // pred_check_branch
      %59 = sbr.rel (0) target = $region25
    $region24: #{tpu_custom_call.1} parent=1 // pred_region
      %61 = dma.done [#allocation4], 128
    $region25: #{tpu_custom_call.1} parent=1 // pred_fallthru
      _
    %62 = vsyncpa [#allocation3], 1
    %63 = vsyncpa [#allocation6], 1
    %64 = vsyncpa [#allocation4], 1

</llo_original>
